<compile_context>
chip_gen: v5e
topology: v5e:2x2
jax: 0.10.0
libtpu: 0.0.40
codegen_flags: <defaults>
</compile_context>

<pallas_src>
import functools

import jax
import jax.numpy as jnp
from jax.experimental import pallas as pl
from jax.experimental.pallas import tpu as pltpu


def _round_up(x, m):
    return ((x + m - 1) // m) * m


def _cdiv(a, b):
    return (a + b - 1) // b


def _ss_loss_kernel(p_ref, t_ref, o_ref, a_acc, b_acc, t_acc, *,
                    true_hw, ragged_hw):
    # p_ref/t_ref : (row_tile, hw_tile) block of flattened (N*C, HW) inputs
    # o_ref       : (row_tile, 128) per-(n,c) loss term broadcast over lanes
    # a/b/t_acc   : (row_tile, 1) f32 running sums of d^2, d^2*t, t
    hw_i = pl.program_id(1)
    n_hw = pl.num_programs(1)
    row_tile, hw_tile = p_ref.shape

    @pl.when(hw_i == 0)
    def _init():
        a_acc[...] = jnp.zeros_like(a_acc)
        b_acc[...] = jnp.zeros_like(b_acc)
        t_acc[...] = jnp.zeros_like(t_acc)

    def _accumulate(mask_cols):
        # Cast after the (possibly bf16) DMA load; accumulate in f32.
        p = p_ref[...].astype(jnp.float32)
        t = t_ref[...].astype(jnp.float32)
        if mask_cols:
            # Last HW tile may extend past HW; OOB block contents are garbage,
            # so zero both operands on invalid lanes before summing.
            col = jax.lax.broadcasted_iota(jnp.int32, (row_tile, hw_tile), 1)
            valid = (col + hw_i * hw_tile) < true_hw
            p = jnp.where(valid, p, 0.0)
            t = jnp.where(valid, t, 0.0)
        d2 = (p - t) * (p - t)
        a_acc[...] += jnp.sum(d2, axis=1, keepdims=True)
        b_acc[...] += jnp.sum(d2 * t, axis=1, keepdims=True)
        t_acc[...] += jnp.sum(t, axis=1, keepdims=True)

    if ragged_hw:
        # Pay the mask cost only on the last HW tile.
        @pl.when(hw_i == n_hw - 1)
        def _masked():
            _accumulate(True)

        @pl.when(hw_i < n_hw - 1)
        def _unmasked():
            _accumulate(False)
    else:
        _accumulate(False)

    @pl.when(hw_i == n_hw - 1)
    def _finalize():
        smooth = jnp.float32(1.0)
        a = a_acc[...]
        b = b_acc[...]
        tt = t_acc[...]
        s1 = b / (smooth + tt)
        # sum_hw(1 - t) == HW - sum_hw(t): immune to masking/padding.
        s2 = (a - b) / (smooth + (jnp.float32(true_hw) - tt))
        term = jnp.float32(0.05) * s1 + jnp.float32(0.95) * s2
        o_ref[...] = jnp.broadcast_to(term, o_ref.shape).astype(o_ref.dtype)


def ss_loss(pred, target, *, hw_tile_max=16384,
            block_bytes_target=4 * 1024 * 1024):
    """pred, target: (N, C, H, W) -> per-batch loss of shape (N,) float32."""
    assert pred.shape == target.shape, (pred.shape, target.shape)
    N, C, H, W = pred.shape
    NC, HW = N * C, H * W
    LANE = 128
    # jnp.float32(HW) must be exact for the s2 denominator.
    assert HW < (1 << 24), "H*W must be < 2**24 for exact f32 pixel count"

    p_itemsize = jnp.dtype(pred.dtype).itemsize
    t_itemsize = jnp.dtype(target.dtype).itemsize
    # Dtype-aware sublane multiple: 8 for 4B, 16 for 2B, 32 for 1B elements.
    sub_req = {4: 8, 2: 16, 1: 32}
    SUB = max(sub_req.get(p_itemsize, 8), sub_req.get(t_itemsize, 8))

    # Free, contiguous reshape -- no transpose, no dtype change, no padding.
    p = pred.reshape(NC, HW)
    t = target.reshape(NC, HW)

    # --- HW tiling: padding bounded by <128 elems per tile, never a full tile.
    hw_tile_max = max(_round_up(hw_tile_max, LANE), LANE)
    n_hw = _cdiv(_round_up(HW, LANE), hw_tile_max)
    hw_tile = _round_up(_cdiv(HW, n_hw), LANE)
    if hw_tile >= HW:
        hw_tile = HW              # single full-extent block (no mask needed)
    n_hw = _cdiv(HW, hw_tile)
    ragged_hw = (HW % hw_tile) != 0

    # --- Row tiling from a per-block byte budget (large lane-dense DMAs).
    block_bytes_target = min(block_bytes_target, 8 * 1024 * 1024)
    in_itemsize = max(p_itemsize, t_itemsize)
    nc_sub = _round_up(NC, SUB)
    row_tile = _round_up(max(1, block_bytes_target // (hw_tile * in_itemsize)),
                         SUB)
    row_tile = max(SUB, min(row_tile, nc_sub))
    # Guarantee >= 2 row tiles when NC allows (both v7x TensorCores get work).
    if row_tile >= NC and nc_sub >= 2 * SUB:
        row_tile = _round_up(_cdiv(NC, 2), SUB)
    if row_tile > NC:
        row_tile = NC             # full-extent row block (tiny NC)
    n_row = _cdiv(NC, row_tile)

    grid = (n_row, n_hw)

    # --- VMEM budget from the actual double-buffered blocks (+ slack).
    block_in_bytes = row_tile * hw_tile * (p_itemsize + t_itemsize)
    out_block_bytes = row_tile * 128 * 4
    scratch_bytes = 3 * row_tile * 128 * 4   # (row_tile,1) pads to a lane group
    vmem_limit = 2 * block_in_bytes + 2 * out_block_bytes + scratch_bytes
    vmem_limit = min(max(vmem_limit + (4 << 20), 32 << 20), 56 << 20)

    kernel = functools.partial(_ss_loss_kernel, true_hw=HW, ragged_hw=ragged_hw)

    terms = pl.pallas_call(
        kernel,
        out_shape=jax.ShapeDtypeStruct((n_row * row_tile, 128), jnp.float32),
        grid_spec=pltpu.PrefetchScalarGridSpec(
            num_scalar_prefetch=0,
            grid=grid,
            in_specs=[
                pl.BlockSpec((row_tile, hw_tile), lambda r, h: (r, h)),
                pl.BlockSpec((row_tile, hw_tile), lambda r, h: (r, h)),
            ],
            out_specs=pl.BlockSpec((row_tile, 128), lambda r, h: (r, 0)),
            scratch_shapes=[pltpu.VMEM((row_tile, 1), jnp.float32)] * 3,
        ),
        compiler_params=pltpu.CompilerParams(
            dimension_semantics=("parallel", "arbitrary"),
            vmem_limit_bytes=vmem_limit,
        ),
    )(p, t)

    # Tiny epilogue: per-(n,c) term -> per-batch loss (padded rows discarded).
    return terms[:NC, 0].reshape(N, C).sum(axis=1) / C


def _ss_loss_ref(pred, target):
    smooth = 1.0
    pred = pred.astype(jnp.float32)
    target = target.astype(jnp.float32)
    d2 = (pred - target) ** 2
    s1 = (d2 * target).sum(axis=(2, 3)) / (smooth + target.sum(axis=(2, 3)))
    s2 = (d2 * (1.0 - target)).sum(axis=(2, 3)) / (
        smooth + (1.0 - target).sum(axis=(2, 3)))
    return (0.05 * s1 + 0.95 * s2).sum(axis=1) / pred.shape[1]


if __name__ == "__main__":
    key = jax.random.PRNGKey(0)
    k1, k2 = jax.random.split(key)
    N, C, H, W = 2, 4, 16, 16
    pred = jax.random.uniform(k1, (N, C, H, W), dtype=jnp.float32)
    target = (jax.random.uniform(k2, (N, C, H, W)) > 0.5).astype(jnp.float32)

    loss = ss_loss(pred, target)
    jax.block_until_ready(loss)

    ref = _ss_loss_ref(pred, target)
    assert loss.shape == (N,), (loss.shape,)
    assert jnp.allclose(loss, ref, atol=1e-5, rtol=1e-5), (loss, ref)
    print("KERNEL_OK")
</pallas_src>

<mosaic_0001>
module attributes {stable_mosaic.version = 11 : i64} {
  func.func @_ss_loss_kernel(%arg0: i32, %arg1: i32, %arg2: memref<8x256xf32, #tpu.memory_space<vmem>>, %arg3: memref<8x256xf32, #tpu.memory_space<vmem>>, %arg4: memref<8x128xf32, #tpu.memory_space<vmem>>, %arg5: memref<8x1xf32, #tpu.memory_space<vmem>>, %arg6: memref<8x1xf32, #tpu.memory_space<vmem>>, %arg7: memref<8x1xf32, #tpu.memory_space<vmem>>) attributes {dimension_semantics = [#tpu.dimension_semantics<parallel>, #tpu.dimension_semantics<arbitrary>], iteration_bounds = array<i64: 1, 1>, scalar_prefetch = 0 : i64, scratch_operands = 3 : i64, tpu.core_type = #tpu.core_type<tc>, window_params = [{transform_indices = @transform_0, window_bounds = array<i64: 8, 256>}, {transform_indices = @transform_1, window_bounds = array<i64: 8, 256>}, {transform_indices = @transform_2, window_bounds = array<i64: 8, 128>}]} {
    %c0_i32 = arith.constant 0 : i32
    %0 = arith.cmpi eq, %arg1, %c0_i32 : i32
    %1 = arith.extui %0 : i1 to i32
    %c0_i32_0 = arith.constant 0 : i32
    %2 = arith.cmpi ne, %1, %c0_i32_0 : i32
    scf.if %2 {
      %cst_20 = arith.constant 0.000000e+00 : f32
      %27 = vector.broadcast %cst_20 : f32 to vector<8x1xf32>
      %c0_21 = arith.constant 0 : index
      %c0_22 = arith.constant 0 : index
      %28 = vector.load %arg5[%c0_21, %c0_22] : memref<8x1xf32, #tpu.memory_space<vmem>>, vector<8x1xf32>
      tpu.vector_store %arg5[%c0_21, %c0_22], %27 {strides = array<i32>} : memref<8x1xf32, #tpu.memory_space<vmem>>, vector<8x1xf32>,
      %cst_23 = arith.constant 0.000000e+00 : f32
      %29 = vector.broadcast %cst_23 : f32 to vector<8x1xf32>
      %c0_24 = arith.constant 0 : index
      %c0_25 = arith.constant 0 : index
      %30 = vector.load %arg6[%c0_24, %c0_25] : memref<8x1xf32, #tpu.memory_space<vmem>>, vector<8x1xf32>
      tpu.vector_store %arg6[%c0_24, %c0_25], %29 {strides = array<i32>} : memref<8x1xf32, #tpu.memory_space<vmem>>, vector<8x1xf32>,
      %cst_26 = arith.constant 0.000000e+00 : f32
      %31 = vector.broadcast %cst_26 : f32 to vector<8x1xf32>
      %c0_27 = arith.constant 0 : index
      %c0_28 = arith.constant 0 : index
      %32 = vector.load %arg7[%c0_27, %c0_28] : memref<8x1xf32, #tpu.memory_space<vmem>>, vector<8x1xf32>
      tpu.vector_store %arg7[%c0_27, %c0_28], %31 {strides = array<i32>} : memref<8x1xf32, #tpu.memory_space<vmem>>, vector<8x1xf32>,
    } else {
    }
    %c0 = arith.constant 0 : index
    %c0_1 = arith.constant 0 : index
    %3 = vector.load %arg2[%c0, %c0_1] : memref<8x256xf32, #tpu.memory_space<vmem>>, vector<8x256xf32>
    %c0_2 = arith.constant 0 : index
    %c0_3 = arith.constant 0 : index
    %4 = vector.load %arg3[%c0_2, %c0_3] : memref<8x256xf32, #tpu.memory_space<vmem>>, vector<8x256xf32>
    %5 = arith.subf %3, %4 : vector<8x256xf32>
    %6 = arith.subf %3, %4 : vector<8x256xf32>
    %7 = arith.mulf %5, %6 : vector<8x256xf32>
    %c0_4 = arith.constant 0 : index
    %c0_5 = arith.constant 0 : index
    %8 = vector.load %arg5[%c0_4, %c0_5] : memref<8x1xf32, #tpu.memory_space<vmem>>, vector<8x1xf32>
    %cst = arith.constant dense<0.000000e+00> : vector<8xf32>
    %9 = vector.multi_reduction <add>, %7, %cst [1] : vector<8x256xf32> to vector<8xf32>
    %10 = vector.shape_cast %9 : vector<8xf32> to vector<8x1xf32>
    %11 = arith.addf %8, %10 : vector<8x1xf32>
    %c0_6 = arith.constant 0 : index
    %c0_7 = arith.constant 0 : index
    %12 = vector.load %arg5[%c0_6, %c0_7] : memref<8x1xf32, #tpu.memory_space<vmem>>, vector<8x1xf32>
    tpu.vector_store %arg5[%c0_6, %c0_7], %11 {strides = array<i32>} : memref<8x1xf32, #tpu.memory_space<vmem>>, vector<8x1xf32>,
    %c0_8 = arith.constant 0 : index
    %c0_9 = arith.constant 0 : index
    %13 = vector.load %arg6[%c0_8, %c0_9] : memref<8x1xf32, #tpu.memory_space<vmem>>, vector<8x1xf32>
    %14 = arith.mulf %7, %4 : vector<8x256xf32>
    %cst_10 = arith.constant dense<0.000000e+00> : vector<8xf32>
    %15 = vector.multi_reduction <add>, %14, %cst_10 [1] : vector<8x256xf32> to vector<8xf32>
    %16 = vector.shape_cast %15 : vector<8xf32> to vector<8x1xf32>
    %17 = arith.addf %13, %16 : vector<8x1xf32>
    %c0_11 = arith.constant 0 : index
    %c0_12 = arith.constant 0 : index
    %18 = vector.load %arg6[%c0_11, %c0_12] : memref<8x1xf32, #tpu.memory_space<vmem>>, vector<8x1xf32>
    tpu.vector_store %arg6[%c0_11, %c0_12], %17 {strides = array<i32>} : memref<8x1xf32, #tpu.memory_space<vmem>>, vector<8x1xf32>,
    %c0_13 = arith.constant 0 : index
    %c0_14 = arith.constant 0 : index
    %19 = vector.load %arg7[%c0_13, %c0_14] : memref<8x1xf32, #tpu.memory_space<vmem>>, vector<8x1xf32>
    %cst_15 = arith.constant dense<0.000000e+00> : vector<8xf32>
    %20 = vector.multi_reduction <add>, %4, %cst_15 [1] : vector<8x256xf32> to vector<8xf32>
    %21 = vector.shape_cast %20 : vector<8xf32> to vector<8x1xf32>
    %22 = arith.addf %19, %21 : vector<8x1xf32>
    %c0_16 = arith.constant 0 : index
    %c0_17 = arith.constant 0 : index
    %23 = vector.load %arg7[%c0_16, %c0_17] : memref<8x1xf32, #tpu.memory_space<vmem>>, vector<8x1xf32>
    tpu.vector_store %arg7[%c0_16, %c0_17], %22 {strides = array<i32>} : memref<8x1xf32, #tpu.memory_space<vmem>>, vector<8x1xf32>,
    %c0_i32_18 = arith.constant 0 : i32
    %24 = arith.cmpi eq, %arg1, %c0_i32_18 : i32
    %25 = arith.extui %24 : i1 to i32
    %c0_i32_19 = arith.constant 0 : i32
    %26 = arith.cmpi ne, %25, %c0_i32_19 : i32
    scf.if %26 {
      %c0_20 = arith.constant 0 : index
      %c0_21 = arith.constant 0 : index
      %27 = vector.load %arg5[%c0_20, %c0_21] : memref<8x1xf32, #tpu.memory_space<vmem>>, vector<8x1xf32>
      %c0_22 = arith.constant 0 : index
      %c0_23 = arith.constant 0 : index
      %28 = vector.load %arg6[%c0_22, %c0_23] : memref<8x1xf32, #tpu.memory_space<vmem>>, vector<8x1xf32>
      %c0_24 = arith.constant 0 : index
      %c0_25 = arith.constant 0 : index
      %29 = vector.load %arg7[%c0_24, %c0_25] : memref<8x1xf32, #tpu.memory_space<vmem>>, vector<8x1xf32>
      %cst_26 = arith.constant 1.000000e+00 : f32
      %30 = vector.broadcast %cst_26 : f32 to vector<8x1xf32>
      %31 = arith.addf %30, %29 : vector<8x1xf32>
      %32 = arith.divf %28, %31 : vector<8x1xf32>
      %33 = arith.subf %27, %28 : vector<8x1xf32>
      %cst_27 = arith.constant 2.560000e+02 : f32
      %34 = vector.broadcast %cst_27 : f32 to vector<8x1xf32>
      %35 = arith.subf %34, %29 : vector<8x1xf32>
      %cst_28 = arith.constant 1.000000e+00 : f32
      %36 = vector.broadcast %cst_28 : f32 to vector<8x1xf32>
      %37 = arith.addf %36, %35 : vector<8x1xf32>
      %38 = arith.divf %33, %37 : vector<8x1xf32>
      %cst_29 = arith.constant 5.000000e-02 : f32
      %39 = vector.broadcast %cst_29 : f32 to vector<8x1xf32>
      %40 = arith.mulf %39, %32 : vector<8x1xf32>
      %cst_30 = arith.constant 0.949999988 : f32
      %41 = vector.broadcast %cst_30 : f32 to vector<8x1xf32>
      %42 = arith.mulf %41, %38 : vector<8x1xf32>
      %43 = arith.addf %40, %42 : vector<8x1xf32>
      %44 = vector.shape_cast %43 : vector<8x1xf32> to vector<8x1xf32>
      %45 = vector.broadcast %44 : vector<8x1xf32> to vector<8x128xf32>
      %c0_31 = arith.constant 0 : index
      %c0_32 = arith.constant 0 : index
      %46 = vector.load %arg4[%c0_31, %c0_32] : memref<8x128xf32, #tpu.memory_space<vmem>>, vector<8x128xf32>
      tpu.vector_store %arg4[%c0_31, %c0_32], %45 {strides = array<i32>} : memref<8x128xf32, #tpu.memory_space<vmem>>, vector<8x128xf32>,
    } else {
    }
    return
  }
  func.func @transform_0(%arg0: i32, %arg1: i32) -> (i32, i32) {
    %c0_i32 = arith.constant 0 : i32
    return %arg0, %arg1 : i32, i32
  }
  func.func @transform_1(%arg0: i32, %arg1: i32) -> (i32, i32) {
    %c0_i32 = arith.constant 0 : i32
    return %arg0, %arg1 : i32, i32
  }
  func.func @transform_2(%arg0: i32, %arg1: i32) -> (i32, i32) {
    %c0_i32 = arith.constant 0 : i32
    %c0_i32_0 = arith.constant 0 : i32
    return %arg0, %c0_i32 : i32, i32
  }
}

</mosaic_0001>

<llo_original>
// kernel: tpu_custom_call.1
$region0: #{tpu_custom_call.1}
  #allocation0 [shape = 'u32[]', space=smem, size = 0x4, offset = 0x4, fixed_abs, tag = 'smem constant byte address 0x4 - core index']
  #allocation1 [shape = 'u32[72,128]{1,0:T(1,128)}', space=vmem, size = 0x9000, scoped, tag = 'internal scratch']
  #allocation2 [shape = 'f32[8,1]{1,0:T(8,128)}', space=vmem, size = 0x1000, scoped, tag = 'scratch operand']
  #allocation3 [shape = 'f32[8,1]{1,0:T(8,128)}', space=vmem, size = 0x1000, scoped, tag = 'scratch operand']
  #allocation4 [shape = 'f32[8,1]{1,0:T(8,128)}', space=vmem, size = 0x1000, scoped, tag = 'scratch operand']
  %s0 = inlined_call_operand.hbm [shape: f32[8,256], index: 0, kind: input, shape index: {}]
  %s1 = inlined_call_operand.hbm [shape: f32[8,256], index: 1, kind: input, shape index: {}]
  %s2 = inlined_call_operand.hbm [shape: f32[8,128], index: 2, kind: output, shape index: {}]
  %s3 = sld [smem:[#allocation0]]
  $region34: #{tpu_custom_call.1} parent=0
    _
  %s5 = ssub.s32 1, %s3
  %s6 = scalar_select 0, %s5, %s3
  $region1: #{tpu_custom_call.1} parent=0
    #allocation5 [shape = 'u8[8192]{0}', space=vmem, size = 0x2000, scoped, tag = 'input window, operand 0, single buffered']
    #allocation6 [shape = 's32[1]{0}', space=sflag, size = 0x4, scoped, tag = 'scoped memory for tpu_custom_call.1']
    #allocation7 [shape = 's32[1]{0}', space=sflag, size = 0x4, scoped, tag = 'scoped memory for tpu_custom_call.1']
    #allocation8 [shape = 'u8[8192]{0}', space=vmem, size = 0x2000, scoped, tag = 'input window, operand 1, single buffered']
    #allocation9 [shape = 's32[1]{0}', space=sflag, size = 0x4, scoped, tag = 'scoped memory for tpu_custom_call.1']
    #allocation10 [shape = 'u8[4096]{0}', space=vmem, size = 0x1000, scoped, tag = 'output window, operand 0, single buffered']
    %7 = vsyncpa [#allocation6], 0
    %8 = vsyncpa [#allocation9], 0
    %9 = vsyncpa [#allocation7], 0
    // Predicated region
    $region2: #{tpu_custom_call.1} parent=1 // pred_check
      _
    $region3: #{tpu_custom_call.1} parent=1 // pred_check_branch
      %11 = sbr.rel (0) target = $region5
    $region4: #{tpu_custom_call.1} parent=1 // pred_region
      %13 = vsyncadd [#allocation6], 0
      %s15 = sshll.u32 %s0, 4
      %s16 = int_to_ptr.hbm [resolvable:$true] %s15
      %s17 = sshll.u32 [#allocation5], 4
      %s18 = int_to_ptr.vmem [resolvable:$true] %s17
      %20 = dma.hbm_to_vmem [thread:$0]  %s16, 256, %s18, [#allocation6]
    $region5: #{tpu_custom_call.1} parent=1 // pred_fallthru
      _
    // Predicated region
    $region6: #{tpu_custom_call.1} parent=1 // pred_check
      _
    $region7: #{tpu_custom_call.1} parent=1 // pred_check_branch
      %22 = sbr.rel (0) target = $region9
    $region8: #{tpu_custom_call.1} parent=1 // pred_region
      %24 = vsyncadd [#allocation9], 0
      %s26 = sshll.u32 %s1, 4
      %s27 = int_to_ptr.hbm [resolvable:$true] %s26
      %s28 = sshll.u32 [#allocation8], 4
      %s29 = int_to_ptr.vmem [resolvable:$true] %s28
      %31 = dma.hbm_to_vmem [thread:$0]  %s27, 256, %s29, [#allocation9]
    $region9: #{tpu_custom_call.1} parent=1 // pred_fallthru
      _
    // Predicated region
    $region10: #{tpu_custom_call.1} parent=1 // pred_check
      _
    $region11: #{tpu_custom_call.1} parent=1 // pred_check_branch
      %33 = sbr.rel (0) target = $region13
    $region12: #{tpu_custom_call.1} parent=1 // pred_region
      %35 = dma.done [#allocation6], 256
    $region13: #{tpu_custom_call.1} parent=1 // pred_fallthru
      _
    // Predicated region
    $region14: #{tpu_custom_call.1} parent=1 // pred_check
      _
    $region15: #{tpu_custom_call.1} parent=1 // pred_check_branch
      %37 = sbr.rel (0) target = $region17
    $region16: #{tpu_custom_call.1} parent=1 // pred_region
      %39 = dma.done [#allocation9], 256
    $region17: #{tpu_custom_call.1} parent=1 // pred_fallthru
      _
    %p40 = scmp.eq.s32.totalorder 0, 0
    // Predicated region
    $region18: #{tpu_custom_call.1} parent=1 // pred_check
      %p41 = pneg %p40
    $region19: #{tpu_custom_call.1} parent=1 // pred_check_branch
      %43 = sbr.rel (%p41) target = $region21
    $region20: #{tpu_custom_call.1} parent=1 // pred_region
      %vm44 = vcmask 7168
      %45 = vst.msk [vmem:[#allocation2] sm:$0xff] %vm44, 0.0
      %46 = vst.msk [vmem:[#allocation3] sm:$0xff] %vm44, 0.0
      %47 = vst.msk [vmem:[#allocation4] sm:$0xff] %vm44, 0.0
    $region21: #{tpu_custom_call.1} parent=1 // pred_fallthru
      _
    %v48 = vld [vmem:[#allocation5] sm:$0xff]
    %v49 = vld [vmem:[#allocation5 + $0x8] sm:$0xff]
    %v50 = vld [vmem:[#allocation8] sm:$0xff]
    %v51 = vld [vmem:[#allocation8 + $0x8] sm:$0xff]
    %v52 = vsub.f32 %v48, %v50
    %v53 = vsub.f32 %v49, %v51
    %v54 = vmul.f32 %v52, %v52
    %v55 = vmul.f32 %v53, %v53
    %v56 = vld [vmem:[#allocation2] sm:$0xff]
    %v57 = vadd.f32 %v54, %v55
    %58 = vadd.xlane.f32.xlu0 %v57
    %v59 = vpop.xlane.xlu0 %58
    %v60 = vadd.f32 %v56, %v59
    %vm61 = vcmask 7168
    %62 = vst.msk [vmem:[#allocation2] sm:$0xff] %vm61, %v60
    %v63 = vld [vmem:[#allocation3] sm:$0xff]
    %v64 = vmul.f32 %v54, %v50
    %v65 = vmul.f32 %v55, %v51
    %v66 = vadd.f32 %v64, %v65
    %67 = vadd.xlane.f32.xlu0 %v66
    %v68 = vpop.xlane.xlu0 %67
    %v69 = vadd.f32 %v63, %v68
    %70 = vst.msk [vmem:[#allocation3] sm:$0xff] %vm61, %v69
    %v71 = vld [vmem:[#allocation4] sm:$0xff]
    %v72 = vadd.f32 %v50, %v51
    %73 = vadd.xlane.f32.xlu0 %v72
    %v74 = vpop.xlane.xlu0 %73
    %v75 = vadd.f32 %v71, %v74
    %76 = vst.msk [vmem:[#allocation4] sm:$0xff] %vm61, %v75
    // Predicated region
    $region22: #{tpu_custom_call.1} parent=1 // pred_check
      %p77 = pneg %p40
    $region23: #{tpu_custom_call.1} parent=1 // pred_check_branch
      %79 = sbr.rel (%p77) target = $region25
    $region24: #{tpu_custom_call.1} parent=1 // pred_region
      %v80 = vld [vmem:[#allocation2] sm:$0xff]
      %v81 = vld [vmem:[#allocation3] sm:$0xff]
      %v82 = vld [vmem:[#allocation4] sm:$0xff]
      %v83 = vadd.f32 %v82, 1.0
      %v84 = vrcp.pop %v83
      %v85 = vmul.f32 %v83, %v84
      %v86 = vsub.f32 1.0, %v85
      %v87 = vmul.f32 %v84, %v86
      %v88 = vadd.f32 %v84, %v87
      %vm89 = vweird.f32 %v83
      %vm90 = vweird.f32 %v84
      %vm91 = vmor %vm89, %vm90
      %v92 = vsel %vm91, %v84, %v88
      %v93 = vand.u32 2147483647, %v83
      %vm94 = vcmp.eq.f32.partialorder %v93, 8.507059e+37
      %v95 = vand.u32 %v83, 2147483648
      %v96 = vor.u32 1.1754944e-38, %v95
      %v97 = vsel %vm94, %v96, %v92
      %v98 = vmul.f32 %v81, %v97
      %v99 = vsub.f32 %v80, %v81
      %v100 = vsub.f32 256.0, %v82
      %v101 = vadd.f32 %v100, 1.0
      %v102 = vrcp.pop %v101
      %v103 = vmul.f32 %v101, %v102
      %v104 = vsub.f32 1.0, %v103
      %v105 = vmul.f32 %v102, %v104
      %v106 = vadd.f32 %v102, %v105
      %vm107 = vweird.f32 %v101
      %vm108 = vweird.f32 %v102
      %vm109 = vmor %vm107, %vm108
      %v110 = vsel %vm109, %v102, %v106
      %v111 = vand.u32 2147483647, %v101
      %vm112 = vcmp.eq.f32.partialorder %v111, 8.507059e+37
      %v113 = vand.u32 %v101, 2147483648
      %v114 = vor.u32 1.1754944e-38, %v113
      %v115 = vsel %vm112, %v114, %v110
      %v116 = vmul.f32 %v99, %v115
      %v117 = vmul.f32 %v98, 0.05
      %v118 = vmul.f32 %v116, 0.95
      %v119 = vadd.f32 %v117, %v118
      %121 = vset.pattern.permute.xlu0 0
      %122 = vperm.xlu0 %121, %v119
      %v123 = vpop.permute.xlu0 %122
      %125 = vst [vmem:[#allocation10] sm:$0xff] %v123
    $region25: #{tpu_custom_call.1} parent=1 // pred_fallthru
      _
    // Predicated region
    $region26: #{tpu_custom_call.1} parent=1 // pred_check
      _
    $region27: #{tpu_custom_call.1} parent=1 // pred_check_branch
      %127 = sbr.rel (0) target = $region29
    $region28: #{tpu_custom_call.1} parent=1 // pred_region
      %129 = vsyncadd [#allocation7], 0
      %s131 = sshll.u32 [#allocation10], 4
      %s132 = int_to_ptr.vmem [resolvable:$true] %s131
      %s133 = sshll.u32 %s2, 4
      %s134 = int_to_ptr.hbm [resolvable:$true] %s133
      %136 = dma.vmem_to_hbm [thread:$0]  %s132, 128, %s134, [#allocation7]
    $region29: #{tpu_custom_call.1} parent=1 // pred_fallthru
      _
    // Predicated region
    $region30: #{tpu_custom_call.1} parent=1 // pred_check
      _
    $region31: #{tpu_custom_call.1} parent=1 // pred_check_branch
      %138 = sbr.rel (0) target = $region33
    $region32: #{tpu_custom_call.1} parent=1 // pred_region
      %140 = dma.done [#allocation7], 128
    $region33: #{tpu_custom_call.1} parent=1 // pred_fallthru
      _
    %141 = vsyncpa [#allocation6], 1
    %142 = vsyncpa [#allocation9], 1
    %143 = vsyncpa [#allocation7], 1

</llo_original>
